<compile_context>
chip_gen: v6e
topology: v6e:2x2x1
jax: 0.10.0
libtpu: 0.0.40
codegen_flags: <defaults>
</compile_context>

<pallas_src>
import functools
import math

import jax
import jax.numpy as jnp
from jax.experimental import pallas as pl

# ---- cfg.MODEL.UISE.* (synthetic, small) -------------------------------------
HIDDEN_DIM = 32
NUM_PROPOSALS = 8          # query sequence length
CONV_KERNEL_SIZE_2D = 1    # must be 1 for LayerNorm(hidden_dim) to be shape-valid
EMBED_DIM = HIDDEN_DIM * CONV_KERNEL_SIZE_2D ** 2
NUM_HEADS = 8              # fixed in the module
HEAD_DIM = EMBED_DIM // NUM_HEADS
LN_EPS = 1e-5
MASK_NEG = -1e9            # additive mask value (stays f32; exp() -> exactly 0)


def _mha_ln_kernel(x_ref, w_ref, vec_ref, mask_ref, sel_ref, o_ref,
                   *, blq, heads):
    """Whole (tiny) problem in one invocation.

    x_ref   : (B*Lq + B*Lv, E) f32   stacked [query rows ; key/value rows]
    w_ref   : (E, 4E)          bf16  [wq*scale | wk | wv | wo]
    vec_ref : (8, E)           f32   rows: bq*scale, bk, bv, bo, gamma, beta, 0, 0
    mask_ref: (E + B*Lq, H*B*Lv) f32 rows 0..E-1: head mask (0/1),
                                     rows E..: additive batch mask (0 / MASK_NEG)
    sel_ref : (H*B*Lv, E)      f32   block-diagonal 0/1 selector (= head_mask.T)
    o_ref   : (B*Lq, E)        f32
    """
    f32 = jnp.float32
    bf16 = jnp.bfloat16

    emb = x_ref.shape[1]

    # --- fused QKV (+wo, ignored) projection: one lane-dense matmul ----------
    x16 = x_ref[...].astype(bf16)                         # (blq+blv, E)
    w16 = w_ref[...]                                      # (E, 4E) bf16
    proj = jnp.dot(x16, w16, preferred_element_type=f32)  # (blq+blv, 4E) f32

    vecs = vec_ref[...]                                   # (8, E) f32
    bq, bk, bv = vecs[0:1, :], vecs[1:2, :], vecs[2:3, :]
    bo, gamma, beta = vecs[3:4, :], vecs[4:5, :], vecs[5:6, :]

    qp = proj[:blq, 0:emb] + bq            # (blq, E)   scale already folded in
    kp = proj[blq:, emb:2 * emb] + bk      # (blv, E)
    vp = proj[blq:, 2 * emb:3 * emb] + bv  # (blv, E)

    masks = mask_ref[...]
    head_mask = masks[0:emb, :]            # (E, H*blv)  0/1
    batch_mask = masks[emb:, :]            # (blq, H*blv) 0 / MASK_NEG

    # --- per-head QK^T for all heads in ONE matmul ----------------------------
    # (lane concatenate kept instead of jnp.tile for robust Mosaic lowering;
    #  the real savings are the precomputed mask + bf16 operands)
    kt_rep = jnp.concatenate([kp.T] * heads, axis=1)      # (E, H*blv) f32
    kbd = (kt_rep * head_mask).astype(bf16)               # block-diag K^T
    logits = jnp.dot(qp.astype(bf16), kbd,
                     preferred_element_type=f32)          # (blq, H*blv) f32
    logits = logits + batch_mask                          # per-batch restriction

    # --- softmax (global row max is an upper bound for every head/batch) ------
    m = jnp.max(logits, axis=-1, keepdims=True)
    p = jnp.exp(logits - m)                               # masked entries -> 0

    # --- P @ [block-diag V | sel]: attention numerators AND per-head denoms ---
    sel = sel_ref[...]                                    # (H*blv, E) f32
    vbd = jnp.concatenate([vp] * heads, axis=0) * sel     # (H*blv, E) f32
    rhs = jnp.concatenate([vbd, sel], axis=1).astype(bf16)  # (H*blv, 2E)
    fused = jnp.dot(p.astype(bf16), rhs,
                    preferred_element_type=f32)           # (blq, 2E) f32

    attn_un = fused[:, 0:emb]
    # clamp: an underflowed head yields 0 (not Inf/NaN) through approx reciprocal
    denom = jnp.maximum(fused[:, emb:2 * emb], 1e-30)
    attn = attn_un * pl.reciprocal(denom, approx=True)

    # --- output projection + LayerNorm ----------------------------------------
    wo16 = w16[:, 3 * emb:4 * emb]                        # (E, E) bf16
    out = jnp.dot(attn.astype(bf16), wo16, preferred_element_type=f32) + bo
    mu = jnp.mean(out, axis=-1, keepdims=True)
    var = jnp.mean((out - mu) ** 2, axis=-1, keepdims=True)
    o_ref[...] = (out - mu) * jax.lax.rsqrt(var + LN_EPS) * gamma + beta


def prepare_kernel_constants(params, B, Lq, Lv):
    """One-time transform: fold 1/sqrt(head_dim) into the Q projection, pack
    all weights/biases into slabs, and precompute the constant mask tensors."""
    E, H, d = EMBED_DIM, NUM_HEADS, HEAD_DIM
    blq, blv = B * Lq, B * Lv
    hlv = H * blv
    scale = 1.0 / math.sqrt(d)

    # weight slab (E, 4E), bf16 (MXU-native; halves its DMA)
    w_slab = jnp.concatenate(
        [params["wq"] * scale, params["wk"], params["wv"], params["wo"]],
        axis=1).astype(jnp.bfloat16)

    # bias / LayerNorm vectors packed to an 8-sublane slab (8, E), f32
    vec_slab = jnp.concatenate(
        [params["bq"] * scale, params["bk"], params["bv"], params["bo"],
         params["gamma"], params["beta"], jnp.zeros((2, E), jnp.float32)],
        axis=0)

    # head mask:  head_mask[f, h*blv + k] = 1 iff feature f belongs to head h
    feat = jnp.arange(E)
    col = jnp.arange(hlv)
    head_mask = (feat[:, None] // d == col[None, :] // blv).astype(jnp.float32)
    # batch mask: 0 where query row and key row are in the same batch, else -1e9
    q_batch = jnp.arange(blq) // Lq
    k_batch = (col % blv) // Lv
    batch_mask = jnp.where(q_batch[:, None] == k_batch[None, :],
                           0.0, MASK_NEG).astype(jnp.float32)
    masks = jnp.concatenate([head_mask, batch_mask], axis=0)   # (E+blq, hlv)
    sel = head_mask.T                                          # (hlv, E)

    return {"w": w_slab, "vec": vec_slab, "masks": masks, "sel": sel,
            "B": B, "Lq": Lq, "Lv": Lv}


def multi_head_cross_atten(query, value, kconst):
    """kconst must come from prepare_kernel_constants (scale folded, masks built)."""
    B, Lq, E = query.shape
    _, Lv, _ = value.shape
    blq, blv = B * Lq, B * Lv
    assert kconst["masks"].shape == (E + blq, NUM_HEADS * blv), \
        "kconst was prepared for different (B, Lq, Lv) / E"
    assert kconst["sel"].shape == (NUM_HEADS * blv, E)

    # one stacked row slab so a single matmul covers Q, K and V projections
    x = jnp.concatenate([query.reshape(blq, E), value.reshape(blv, E)], axis=0)

    kern = functools.partial(_mha_ln_kernel, blq=blq, heads=NUM_HEADS)

    def full(shape):
        return pl.BlockSpec(shape, lambda *_: (0,) * len(shape))

    out2d = pl.pallas_call(
        kern,
        out_shape=jax.ShapeDtypeStruct((blq, E), jnp.float32),
        in_specs=[full(x.shape), full(kconst["w"].shape),
                  full(kconst["vec"].shape), full(kconst["masks"].shape),
                  full(kconst["sel"].shape)],
        out_specs=full((blq, E)),
    )(x, kconst["w"], kconst["vec"], kconst["masks"], kconst["sel"])
    return out2d.reshape(B, Lq, E)


def reference(query, value, p):
    """Pure-JAX f32 replica of nn.MultiheadAttention(Q, V, V) + LayerNorm."""
    Q = query @ p["wq"] + p["bq"]
    K = value @ p["wk"] + p["bk"]
    V = value @ p["wv"] + p["bv"]
    B, Lq, E = Q.shape
    Lv = K.shape[1]
    Qh = Q.reshape(B, Lq, NUM_HEADS, HEAD_DIM).transpose(0, 2, 1, 3)
    Kh = K.reshape(B, Lv, NUM_HEADS, HEAD_DIM).transpose(0, 2, 1, 3)
    Vh = V.reshape(B, Lv, NUM_HEADS, HEAD_DIM).transpose(0, 2, 1, 3)
    logits = jnp.einsum("bhqd,bhkd->bhqk", Qh, Kh) / math.sqrt(HEAD_DIM)
    probs = jax.nn.softmax(logits, axis=-1)
    attn = jnp.einsum("bhqk,bhkd->bhqd", probs, Vh)
    attn = attn.transpose(0, 2, 1, 3).reshape(B, Lq, E)
    out = attn @ p["wo"] + p["bo"]
    mu = jnp.mean(out, axis=-1, keepdims=True)
    var = jnp.mean((out - mu) ** 2, axis=-1, keepdims=True)
    return (out - mu) * jax.lax.rsqrt(var + LN_EPS) * p["gamma"] + p["beta"]


def init_params(key):
    ks = jax.random.split(key, 10)
    E = EMBED_DIM
    scale = 1.0 / math.sqrt(E)
    return {
        # projection weights stored in right-multiply form (x @ W), shape (E, E)
        "wq": jax.random.normal(ks[0], (E, E), jnp.float32) * scale,
        "wk": jax.random.normal(ks[1], (E, E), jnp.float32) * scale,
        "wv": jax.random.normal(ks[2], (E, E), jnp.float32) * scale,
        "wo": jax.random.normal(ks[3], (E, E), jnp.float32) * scale,
        "bq": jax.random.normal(ks[4], (1, E), jnp.float32) * 0.02,
        "bk": jax.random.normal(ks[5], (1, E), jnp.float32) * 0.02,
        "bv": jax.random.normal(ks[6], (1, E), jnp.float32) * 0.02,
        "bo": jax.random.normal(ks[7], (1, E), jnp.float32) * 0.02,
        "gamma": 1.0 + 0.1 * jax.random.normal(ks[8], (1, E), jnp.float32),
        "beta": 0.1 * jax.random.normal(ks[9], (1, E), jnp.float32),
    }


if __name__ == "__main__":
    key = jax.random.PRNGKey(0)
    k_q, k_v, k_p = jax.random.split(key, 3)

    B, Lq, Lv, E = 2, NUM_PROPOSALS, 16, EMBED_DIM
    query = jax.random.normal(k_q, (B, Lq, E), jnp.float32)
    value = jax.random.normal(k_v, (B, Lv, E), jnp.float32)
    params = init_params(k_p)
    # one-time constant prep (scale folding + mask/selector precompute), not per-call
    kconst = prepare_kernel_constants(params, B, Lq, Lv)

    out = jax.block_until_ready(multi_head_cross_atten(query, value, kconst))
    ref = jax.block_until_ready(reference(query, value, params))

    assert out.shape == (B, Lq, E)
    assert bool(jnp.all(jnp.isfinite(out)))
    # tolerance accounts for bf16 MXU inputs (f32 accumulate) + approx-reciprocal
    # softmax normalization; structural errors would show up as O(1) mismatches.
    assert jnp.allclose(out, ref, atol=6e-2, rtol=6e-2), "mismatch vs pure-JAX reference"

    print("KERNEL_OK")
</pallas_src>

<mosaic_0001>
module attributes {stable_mosaic.version = 11 : i64} {
  func.func @_mha_ln_kernel(%arg0: memref<48x32xf32, #tpu.memory_space<vmem>>, %arg1: memref<32x128xbf16, #tpu.memory_space<vmem>>, %arg2: memref<8x32xf32, #tpu.memory_space<vmem>>, %arg3: memref<48x256xf32, #tpu.memory_space<vmem>>, %arg4: memref<256x32xf32, #tpu.memory_space<vmem>>, %arg5: memref<16x32xf32, #tpu.memory_space<vmem>>) attributes {dimension_semantics = [], scalar_prefetch = 0 : i64, scratch_operands = 0 : i64, tpu.core_type = #tpu.core_type<tc>} {
    %c0 = arith.constant 0 : index
    %c0_0 = arith.constant 0 : index
    %0 = vector.load %arg0[%c0, %c0_0] : memref<48x32xf32, #tpu.memory_space<vmem>>, vector<48x32xf32>
    %1 = arith.truncf %0 : vector<48x32xf32> to vector<48x32xbf16>
    %c0_1 = arith.constant 0 : index
    %c0_2 = arith.constant 0 : index
    %2 = vector.load %arg1[%c0_1, %c0_2] : memref<32x128xbf16, #tpu.memory_space<vmem>>, vector<32x128xbf16>
    %cst = arith.constant dense<0.000000e+00> : vector<48x128xf32>
    %3 = tpu.matmul %1, %2, %cst {dimension_numbers = #tpu.dot_dimension_numbers<[1], [0], [0], [1], [0, 0, 1, 1], [], []>} : vector<48x32xbf16>, vector<32x128xbf16>, vector<48x128xf32> -> vector<48x128xf32>
    %c0_3 = arith.constant 0 : index
    %c0_4 = arith.constant 0 : index
    %4 = vector.load %arg2[%c0_3, %c0_4] : memref<8x32xf32, #tpu.memory_space<vmem>>, vector<8x32xf32>
    %5 = vector.extract_strided_slice %4 {offsets = [0, 0], sizes = [1, 32], strides = [1, 1]} : vector<8x32xf32> to vector<1x32xf32>
    %6 = vector.extract_strided_slice %4 {offsets = [1, 0], sizes = [1, 32], strides = [1, 1]} : vector<8x32xf32> to vector<1x32xf32>
    %7 = vector.extract_strided_slice %4 {offsets = [2, 0], sizes = [1, 32], strides = [1, 1]} : vector<8x32xf32> to vector<1x32xf32>
    %8 = vector.extract_strided_slice %4 {offsets = [3, 0], sizes = [1, 32], strides = [1, 1]} : vector<8x32xf32> to vector<1x32xf32>
    %9 = vector.extract_strided_slice %4 {offsets = [4, 0], sizes = [1, 32], strides = [1, 1]} : vector<8x32xf32> to vector<1x32xf32>
    %10 = vector.extract_strided_slice %4 {offsets = [5, 0], sizes = [1, 32], strides = [1, 1]} : vector<8x32xf32> to vector<1x32xf32>
    %11 = vector.extract_strided_slice %3 {offsets = [0, 0], sizes = [16, 32], strides = [1, 1]} : vector<48x128xf32> to vector<16x32xf32>
    %12 = vector.broadcast %5 : vector<1x32xf32> to vector<16x32xf32>
    %13 = arith.addf %11, %12 : vector<16x32xf32>
    %14 = vector.extract_strided_slice %3 {offsets = [16, 32], sizes = [32, 32], strides = [1, 1]} : vector<48x128xf32> to vector<32x32xf32>
    %15 = vector.broadcast %6 : vector<1x32xf32> to vector<32x32xf32>
    %16 = arith.addf %14, %15 : vector<32x32xf32>
    %17 = vector.extract_strided_slice %3 {offsets = [16, 64], sizes = [32, 32], strides = [1, 1]} : vector<48x128xf32> to vector<32x32xf32>
    %18 = vector.broadcast %7 : vector<1x32xf32> to vector<32x32xf32>
    %19 = arith.addf %17, %18 : vector<32x32xf32>
    %c0_5 = arith.constant 0 : index
    %c0_6 = arith.constant 0 : index
    %20 = vector.load %arg3[%c0_5, %c0_6] : memref<48x256xf32, #tpu.memory_space<vmem>>, vector<48x256xf32>
    %21 = vector.extract_strided_slice %20 {offsets = [0, 0], sizes = [32, 256], strides = [1, 1]} : vector<48x256xf32> to vector<32x256xf32>
    %22 = vector.extract_strided_slice %20 {offsets = [32, 0], sizes = [16, 256], strides = [1, 1]} : vector<48x256xf32> to vector<16x256xf32>
    %23 = tpu.transpose %16, [1, 0] : vector<32x32xf32> -> vector<32x32xf32>
    %24 = tpu.concatenate %23, %23, %23, %23, %23, %23, %23, %23 in 1 : vector<32x32xf32>, vector<32x32xf32>, vector<32x32xf32>, vector<32x32xf32>, vector<32x32xf32>, vector<32x32xf32>, vector<32x32xf32>, vector<32x32xf32> -> vector<32x256xf32>
    %25 = arith.mulf %24, %21 : vector<32x256xf32>
    %26 = arith.truncf %25 : vector<32x256xf32> to vector<32x256xbf16>
    %27 = arith.truncf %13 : vector<16x32xf32> to vector<16x32xbf16>
    %cst_7 = arith.constant dense<0.000000e+00> : vector<16x256xf32>
    %28 = tpu.matmul %27, %26, %cst_7 {dimension_numbers = #tpu.dot_dimension_numbers<[1], [0], [0], [1], [0, 0, 1, 1], [], []>} : vector<16x32xbf16>, vector<32x256xbf16>, vector<16x256xf32> -> vector<16x256xf32>
    %29 = arith.addf %28, %22 : vector<16x256xf32>
    %cst_8 = arith.constant dense<0xFF800000> : vector<16xf32>
    %30 = vector.multi_reduction <maximumf>, %29, %cst_8 [1] : vector<16x256xf32> to vector<16xf32>
    %31 = vector.shape_cast %30 : vector<16xf32> to vector<16x1xf32>
    %32 = vector.broadcast %31 : vector<16x1xf32> to vector<16x256xf32>
    %33 = arith.subf %29, %32 : vector<16x256xf32>
    %34 = math.exp %33 : vector<16x256xf32>
    %c0_9 = arith.constant 0 : index
    %c0_10 = arith.constant 0 : index
    %35 = vector.load %arg4[%c0_9, %c0_10] : memref<256x32xf32, #tpu.memory_space<vmem>>, vector<256x32xf32>
    %36 = tpu.concatenate %19, %19, %19, %19, %19, %19, %19, %19 in 0 : vector<32x32xf32>, vector<32x32xf32>, vector<32x32xf32>, vector<32x32xf32>, vector<32x32xf32>, vector<32x32xf32>, vector<32x32xf32>, vector<32x32xf32> -> vector<256x32xf32>
    %37 = arith.mulf %36, %35 : vector<256x32xf32>
    %38 = tpu.concatenate %37, %35 in 1 : vector<256x32xf32>, vector<256x32xf32> -> vector<256x64xf32>
    %39 = arith.truncf %38 : vector<256x64xf32> to vector<256x64xbf16>
    %40 = arith.truncf %34 : vector<16x256xf32> to vector<16x256xbf16>
    %cst_11 = arith.constant dense<0.000000e+00> : vector<16x64xf32>
    %41 = tpu.matmul %40, %39, %cst_11 {dimension_numbers = #tpu.dot_dimension_numbers<[1], [0], [0], [1], [0, 0, 1, 1], [], []>} : vector<16x256xbf16>, vector<256x64xbf16>, vector<16x64xf32> -> vector<16x64xf32>
    %42 = vector.extract_strided_slice %41 {offsets = [0, 0], sizes = [16, 32], strides = [1, 1]} : vector<16x64xf32> to vector<16x32xf32>
    %43 = vector.extract_strided_slice %41 {offsets = [0, 32], sizes = [16, 32], strides = [1, 1]} : vector<16x64xf32> to vector<16x32xf32>
    %cst_12 = arith.constant 1.000000e-30 : f32
    %44 = vector.broadcast %cst_12 : f32 to vector<16x32xf32>
    %45 = arith.maximumf %43, %44 : vector<16x32xf32>
    %46 = tpu.reciprocal %45 {approx = true} : vector<16x32xf32> -> vector<16x32xf32>
    %47 = arith.mulf %42, %46 : vector<16x32xf32>
    %48 = vector.extract_strided_slice %2 {offsets = [0, 96], sizes = [32, 32], strides = [1, 1]} : vector<32x128xbf16> to vector<32x32xbf16>
    %49 = arith.truncf %47 : vector<16x32xf32> to vector<16x32xbf16>
    %cst_13 = arith.constant dense<0.000000e+00> : vector<16x32xf32>
    %50 = tpu.matmul %49, %48, %cst_13 {dimension_numbers = #tpu.dot_dimension_numbers<[1], [0], [0], [1], [0, 0, 1, 1], [], []>} : vector<16x32xbf16>, vector<32x32xbf16>, vector<16x32xf32> -> vector<16x32xf32>
    %51 = vector.broadcast %8 : vector<1x32xf32> to vector<16x32xf32>
    %52 = arith.addf %50, %51 : vector<16x32xf32>
    %cst_14 = arith.constant dense<0.000000e+00> : vector<16xf32>
    %53 = vector.multi_reduction <add>, %52, %cst_14 [1] : vector<16x32xf32> to vector<16xf32>
    %54 = vector.shape_cast %53 : vector<16xf32> to vector<16x1xf32>
    %cst_15 = arith.constant 3.200000e+01 : f32
    %55 = vector.broadcast %cst_15 : f32 to vector<16x1xf32>
    %56 = arith.divf %54, %55 : vector<16x1xf32>
    %57 = vector.broadcast %56 : vector<16x1xf32> to vector<16x32xf32>
    %58 = arith.subf %52, %57 : vector<16x32xf32>
    %59 = arith.mulf %58, %58 : vector<16x32xf32>
    %cst_16 = arith.constant dense<0.000000e+00> : vector<16xf32>
    %60 = vector.multi_reduction <add>, %59, %cst_16 [1] : vector<16x32xf32> to vector<16xf32>
    %61 = vector.shape_cast %60 : vector<16xf32> to vector<16x1xf32>
    %cst_17 = arith.constant 3.200000e+01 : f32
    %62 = vector.broadcast %cst_17 : f32 to vector<16x1xf32>
    %63 = arith.divf %61, %62 : vector<16x1xf32>
    %64 = vector.broadcast %56 : vector<16x1xf32> to vector<16x32xf32>
    %65 = arith.subf %52, %64 : vector<16x32xf32>
    %cst_18 = arith.constant 9.99999974E-6 : f32
    %66 = vector.broadcast %cst_18 : f32 to vector<16x1xf32>
    %67 = arith.addf %63, %66 : vector<16x1xf32>
    %68 = math.rsqrt %67 : vector<16x1xf32>
    %69 = vector.broadcast %68 : vector<16x1xf32> to vector<16x32xf32>
    %70 = arith.mulf %65, %69 : vector<16x32xf32>
    %71 = vector.broadcast %9 : vector<1x32xf32> to vector<16x32xf32>
    %72 = arith.mulf %70, %71 : vector<16x32xf32>
    %73 = vector.broadcast %10 : vector<1x32xf32> to vector<16x32xf32>
    %74 = arith.addf %72, %73 : vector<16x32xf32>
    %c0_19 = arith.constant 0 : index
    %c0_20 = arith.constant 0 : index
    %75 = vector.load %arg5[%c0_19, %c0_20] : memref<16x32xf32, #tpu.memory_space<vmem>>, vector<16x32xf32>
    tpu.vector_store %arg5[%c0_19, %c0_20], %74 {strides = array<i32>} : memref<16x32xf32, #tpu.memory_space<vmem>>, vector<16x32xf32>,
    return
  }
}

</mosaic_0001>

<llo_original>
// kernel: tpu_custom_call.1
$region0: #{tpu_custom_call.1}
  #allocation0 [shape = 'u32[]', space=smem, size = 0x4, offset = 0x4, fixed_abs, tag = 'smem constant byte address 0x4 - core index']
  #allocation1 [shape = 'u32[144,128]{1,0:T(1,128)}', space=vmem, size = 0x12000, scoped, tag = 'internal scratch']
  %s0 = inlined_call_operand.vmem [shape: f32[48,32], index: 0, kind: input, shape index: {}]
  %s1 = inlined_call_operand.vmem [shape: bf16[32,128], index: 1, kind: input, shape index: {}]
  %s2 = inlined_call_operand.vmem [shape: f32[8,32], index: 2, kind: input, shape index: {}]
  %s3 = inlined_call_operand.vmem [shape: f32[48,256], index: 3, kind: input, shape index: {}]
  %s4 = inlined_call_operand.vmem [shape: f32[256,32], index: 4, kind: input, shape index: {}]
  %s5 = inlined_call_operand.hbm [shape: f32[16,32], index: 5, kind: output, shape index: {}]
  %s6 = sld [smem:[#allocation0]]
  $region30: #{tpu_custom_call.1} parent=0
    _
  %s8 = ssub.s32 1, %s6
  %s9 = scalar_select 0, %s8, %s6
  $region1: #{tpu_custom_call.1} parent=0
    #allocation2 [shape = 'u8[8192]{0}', space=vmem, size = 0x2000, scoped, tag = 'output window, operand 0, single buffered']
    #allocation3 [shape = 's32[1]{0}', space=sflag, size = 0x4, scoped, tag = 'scoped memory for tpu_custom_call.1']
    %10 = vsyncpa [#allocation3], 0
    // Predicated region
    $region2: #{tpu_custom_call.1} parent=1 // pred_check
      _
    $region3: #{tpu_custom_call.1} parent=1 // pred_check_branch
      %12 = sbr.rel (0) target = $region5
    $region4: #{tpu_custom_call.1} parent=1 // pred_region
      _
    $region5: #{tpu_custom_call.1} parent=1 // pred_fallthru
      _
    // Predicated region
    $region6: #{tpu_custom_call.1} parent=1 // pred_check
      _
    $region7: #{tpu_custom_call.1} parent=1 // pred_check_branch
      %14 = sbr.rel (0) target = $region9
    $region8: #{tpu_custom_call.1} parent=1 // pred_region
      _
    $region9: #{tpu_custom_call.1} parent=1 // pred_fallthru
      _
    // Predicated region
    $region10: #{tpu_custom_call.1} parent=1 // pred_check
      _
    $region11: #{tpu_custom_call.1} parent=1 // pred_check_branch
      %16 = sbr.rel (0) target = $region13
    $region12: #{tpu_custom_call.1} parent=1 // pred_region
      _
    $region13: #{tpu_custom_call.1} parent=1 // pred_fallthru
      _
    // Predicated region
    $region14: #{tpu_custom_call.1} parent=1 // pred_check
      _
    $region15: #{tpu_custom_call.1} parent=1 // pred_check_branch
      %18 = sbr.rel (0) target = $region17
    $region16: #{tpu_custom_call.1} parent=1 // pred_region
      _
    $region17: #{tpu_custom_call.1} parent=1 // pred_fallthru
      _
    // Predicated region
    $region18: #{tpu_custom_call.1} parent=1 // pred_check
      _
    $region19: #{tpu_custom_call.1} parent=1 // pred_check_branch
      %20 = sbr.rel (0) target = $region21
    $region20: #{tpu_custom_call.1} parent=1 // pred_region
      _
    $region21: #{tpu_custom_call.1} parent=1 // pred_fallthru
      _
    %v22 = vld [vmem:[%s0] sm:$0xff]
    %v23 = vld [vmem:[%s0 + $0x8] sm:$0xff]
    %v24 = vld [vmem:[%s0 + $0x10] sm:$0xff]
    %v25 = vld [vmem:[%s0 + $0x18] sm:$0xff]
    %v26 = vld [vmem:[%s0 + $0x20] sm:$0xff]
    %v27 = vld [vmem:[%s0 + $0x28] sm:$0xff]
    %v28 = vpack.c.bf16 %v23, %v22
    %v29 = vpack.c.bf16 %v25, %v24
    %v30 = vpack.c.bf16 %v27, %v26
    %v31 = vld [vmem:[%s1] sm:$0xf]
    %v32 = vld [vmem:[%s1 + $0x4] sm:$0xf]
    %v33 = vld [vmem:[%s1 + $0x8] sm:$0xf]
    %v34 = vld [vmem:[%s1 + $0xc] sm:$0xf]
    %v39 = vunpack.c.l.b16 %v31
    %v40 = vunpack.c.l.b16 %v32
    %v41 = vunpack.c.l.b16 %v33
    %v42 = vunpack.c.l.b16 %v34
    %v43 = vpack.c.b16 %v40, %v39
    %v44 = vpack.c.b16 %v42, %v41
    %vm47 = vcmask 261120
    %v49 = vsel %vm47, %v28, 0
    %v52 = vsel %vm47, %v29, 0
    %v55 = vsel %vm47, %v30, 0
    %57 = vmatprep.subr.bf16.mxu0 0
    %58 = vmatpush1.bf16.msra.mxu0 0
    %59 = vmatprep.subr.bf16.mxu0 0
    %60 = vmatpush1.bf16.msra.mxu0 0
    %61 = vmatprep.subr.bf16.mxu0 0
    %62 = vmatpush1.bf16.msra.mxu0 0
    %63 = vmatprep.subr.bf16.mxu0 0
    %64 = vmatpush1.bf16.msra.mxu0 0
    %65 = vmatprep.subr.bf16.mxu0 0
    %66 = vmatpush1.bf16.msra.mxu0 0
    %67 = vmatprep.subr.bf16.mxu0 0
    %68 = vmatpush1.bf16.msra.mxu0 0
    %69 = vmatprep.subr.bf16.mxu0 0
    %70 = vmatpush1.bf16.msra.mxu0 %v44
    %71 = vmatprep.subr.bf16.mxu0 0
    %72 = vmatpush1.bf16.msra.mxu0 %v43
    %73 = vmatprep.subr.bf16.mxu0 0
    %74 = vmatpush2.bf16.msra.mxu0 0
    %75 = vmatprep.subr.bf16.mxu0 0
    %76 = vmatpush2.bf16.msra.mxu0 0
    %77 = vmatprep.subr.bf16.mxu0 0
    %78 = vmatpush2.bf16.msra.mxu0 0
    %79 = vmatprep.subr.bf16.mxu0 0
    %80 = vmatpush2.bf16.msra.mxu0 0
    %81 = vmatprep.subr.bf16.mxu0 0
    %82 = vmatpush2.bf16.msra.mxu0 0
    %83 = vmatprep.subr.bf16.mxu0 0
    %84 = vmatpush2.bf16.msra.mxu0 0
    %85 = vmatprep.subr.bf16.mxu0 0
    %86 = vmatpush2.bf16.msra.mxu0 0
    %87 = vmatprep.subr.bf16.mxu0 0
    %88 = vmatpush2.bf16.msra.mxu0 0
    %89 = vmatprep.mubr.bf16.mxu0 0
    %90 = vmatmul.mubr.bf16.gmra.mxu0 %v49
    %v91 = vpop.f32.mrf.mxu0
    %v92 = vadd.f32 0.0, %v91
    %v93 = vpop.f32.mrf.mxu0
    %v94 = vpop.f32.mrf.mxu0
    %v95 = vadd.f32 0.0, %v94
    %v96 = vpop.f32.mrf.mxu0
    %97 = vmatprep.mubr.bf16.mxu0 0
    %98 = vmatmul.mubr.bf16.gmra.mxu0 %v52
    %v99 = vpop.f32.mrf.mxu0
    %v100 = vadd.f32 0.0, %v99
    %v101 = vpop.f32.mrf.mxu0
    %v102 = vpop.f32.mrf.mxu0
    %v103 = vadd.f32 0.0, %v102
    %v104 = vpop.f32.mrf.mxu0
    %105 = vmatprep.mubr.bf16.mxu0 0
    %106 = vmatmul.mubr.bf16.gmra.mxu0 %v55
    %v107 = vpop.f32.mrf.mxu0
    %v108 = vadd.f32 0.0, %v107
    %v109 = vpop.f32.mrf.mxu0
    %v110 = vpop.f32.mrf.mxu0
    %v111 = vadd.f32 0.0, %v110
    %v112 = vpop.f32.mrf.mxu0
    %113 = vdwg.mxu0
    %v114 = vld [vmem:[%s2] sm:$0xff]
    %v115 = vlaneseq
    %v116 = vshrl.u32 %v115, 7
    %v117 = vsub.s32 0, %v116
    %v118 = vrot.slane %v114, %v117
    %v119 = vadd.f32 %v92, %v118
    %v120 = vadd.f32 %v95, %v118
    %v121 = vlaneseq
    %v122 = vshrl.u32 %v121, 7
    %v123 = vsub.s32 1, %v122
    %v124 = vrot.slane %v114, %v123
    %126 = vrot.lane.b32.xlu0 %v124, 32
    %v127 = vpop.permute.xlu0 %126
    %v129 = vadd.f32 %v100, %v127
    %v130 = vadd.f32 %v103, %v127
    %v131 = vadd.f32 %v108, %v127
    %v132 = vadd.f32 %v111, %v127
    %v133 = vlaneseq
    %v134 = vshrl.u32 %v133, 7
    %v135 = vsub.s32 2, %v134
    %v136 = vrot.slane %v114, %v135
    %138 = vrot.lane.b32.xlu0 %v136, 64
    %v139 = vpop.permute.xlu0 %138
    %v141 = vadd.f32 %v100, %v139
    %v142 = vadd.f32 %v103, %v139
    %v143 = vadd.f32 %v108, %v139
    %v144 = vadd.f32 %v111, %v139
    %v145 = vld [vmem:[%s3] sm:$0xff]
    %v146 = vld [vmem:[%s3 + $0x8] sm:$0xff]
    %v147 = vld [vmem:[%s3 + $0x10] sm:$0xff]
    %v148 = vld [vmem:[%s3 + $0x18] sm:$0xff]
    %v149 = vld [vmem:[%s3 + $0x20] sm:$0xff]
    %v150 = vld [vmem:[%s3 + $0x28] sm:$0xff]
    %v151 = vld [vmem:[%s3 + $0x30] sm:$0xff]
    %v152 = vld [vmem:[%s3 + $0x38] sm:$0xff]
    %v153 = vld [vmem:[%s3 + $0x40] sm:$0xff]
    %v154 = vld [vmem:[%s3 + $0x48] sm:$0xff]
    %v155 = vld [vmem:[%s3 + $0x50] sm:$0xff]
    %v156 = vld [vmem:[%s3 + $0x58] sm:$0xff]
    %161 = vrot.lane.b32.xlu0 %v129, 96
    %v162 = vpop.permute.xlu0 %161
    %163 = vrot.lane.b32.xlu0 %v130, 96
    %v164 = vpop.permute.xlu0 %163
    %165 = vrot.lane.b32.xlu0 %v131, 96
    %v166 = vpop.permute.xlu0 %165
    %167 = vrot.lane.b32.xlu0 %v132, 96
    %v168 = vpop.permute.xlu0 %167
    %173 = vxpose.xlu0.b32.start [1/16] %v162, 128
    %174 = vxpose.xlu0.b32.cont [2/16] %v164, 128
    %175 = vxpose.xlu0.b32.cont [3/16] %v166, 128
    %176 = vxpose.xlu0.b32.cont [4/16] %v168, 128
    %177 = vxpose.xlu0.b32.cont [5/16] 0.0, 128
    %178 = vxpose.xlu0.b32.cont [6/16] 0.0, 128
    %179 = vxpose.xlu0.b32.cont [7/16] 0.0, 128
    %180 = vxpose.xlu0.b32.cont [8/16] 0.0, 128
    %181 = vxpose.xlu0.b32.cont [9/16] 0.0, 128
    %182 = vxpose.xlu0.b32.cont [10/16] 0.0, 128
    %183 = vxpose.xlu0.b32.cont [11/16] 0.0, 128
    %184 = vxpose.xlu0.b32.cont [12/16] 0.0, 128
    %185 = vxpose.xlu0.b32.cont [13/16] 0.0, 128
    %186 = vxpose.xlu0.b32.cont [14/16] 0.0, 128
    %187 = vxpose.xlu0.b32.cont [15/16] 0.0, 128
    %188 = vxpose.xlu0.b32.end [16/16] 0.0, 128
    %v189 = vpop.trf.xlu0
    %v190 = vpop.trf.xlu0
    %v191 = vpop.trf.xlu0
    %v192 = vpop.trf.xlu0
    %v193 = vpop.trf.xlu0
    %v194 = vpop.trf.xlu0
    %v195 = vpop.trf.xlu0
    %v196 = vpop.trf.xlu0
    %v197 = vpop.trf.xlu0
    %v198 = vpop.trf.xlu0
    %v199 = vpop.trf.xlu0
    %v200 = vpop.trf.xlu0
    %v201 = vpop.trf.xlu0
    %v202 = vpop.trf.xlu0
    %v203 = vpop.trf.xlu0
    %v204 = vpop.trf.xlu0
    %209 = vrot.lane.b32.xlu0 %v189, 32
    %v210 = vpop.permute.xlu0 %209
    %211 = vrot.lane.b32.xlu0 %v190, 32
    %v212 = vpop.permute.xlu0 %211
    %213 = vrot.lane.b32.xlu0 %v191, 32
    %v214 = vpop.permute.xlu0 %213
    %215 = vrot.lane.b32.xlu0 %v192, 32
    %v216 = vpop.permute.xlu0 %215
    %221 = vrot.lane.b32.xlu0 %v189, 64
    %v222 = vpop.permute.xlu0 %221
    %223 = vrot.lane.b32.xlu0 %v190, 64
    %v224 = vpop.permute.xlu0 %223
    %225 = vrot.lane.b32.xlu0 %v191, 64
    %v226 = vpop.permute.xlu0 %225
    %227 = vrot.lane.b32.xlu0 %v192, 64
    %v228 = vpop.permute.xlu0 %227
    %233 = vrot.lane.b32.xlu0 %v189, 96
    %v234 = vpop.permute.xlu0 %233
    %235 = vrot.lane.b32.xlu0 %v190, 96
    %v236 = vpop.permute.xlu0 %235
    %237 = vrot.lane.b32.xlu0 %v191, 96
    %v238 = vpop.permute.xlu0 %237
    %239 = vrot.lane.b32.xlu0 %v192, 96
    %v240 = vpop.permute.xlu0 %239
    %v245 = vsel %vm47, %v189, %v210
    %v246 = vsel %vm47, %v190, %v212
    %v247 = vsel %vm47, %v191, %v214
    %v248 = vsel %vm47, %v192, %v216
    %vm249 = vcmask 523264
    %v250 = vsel %vm249, %v245, %v222
    %v251 = vsel %vm249, %v246, %v224
    %v252 = vsel %vm249, %v247, %v226
    %v253 = vsel %vm249, %v248, %v228
    %vm254 = vcmask 785408
    %v255 = vsel %vm254, %v250, %v234
    %v256 = vsel %vm254, %v251, %v236
    %v257 = vsel %vm254, %v252, %v238
    %v258 = vsel %vm254, %v253, %v240
    %v259 = vmul.f32 %v255, %v145
    %v260 = vmul.f32 %v255, %v146
    %v261 = vmul.f32 %v256, %v147
    %v262 = vmul.f32 %v256, %v148
    %v263 = vmul.f32 %v257, %v149
    %v264 = vmul.f32 %v257, %v150
    %v265 = vmul.f32 %v258, %v151
    %v266 = vmul.f32 %v258, %v152
    %v267 = vpack.c.bf16 %v261, %v259
    %v268 = vpack.c.bf16 %v262, %v260
    %v269 = vpack.c.bf16 %v265, %v263
    %v270 = vpack.c.bf16 %v266, %v264
    %v271 = vpack.c.bf16 %v120, %v119
    %v273 = vsel %vm47, %v271, 0
    %275 = vmatprep.subr.bf16.mxu0 0
    %276 = vmatpush1.bf16.msra.mxu0 0
    %277 = vmatprep.subr.bf16.mxu0 0
    %278 = vmatpush1.bf16.msra.mxu0 0
    %279 = vmatprep.subr.bf16.mxu0 0
    %280 = vmatpush1.bf16.msra.mxu0 0
    %281 = vmatprep.subr.bf16.mxu0 0
    %282 = vmatpush1.bf16.msra.mxu0 0
    %283 = vmatprep.subr.bf16.mxu0 0
    %284 = vmatpush1.bf16.msra.mxu0 0
    %285 = vmatprep.subr.bf16.mxu0 0
    %286 = vmatpush1.bf16.msra.mxu0 0
    %287 = vmatprep.subr.bf16.mxu0 %v270
    %288 = vmatpush1.bf16.msra.mxu0 %v269
    %289 = vmatprep.subr.bf16.mxu0 %v268
    %290 = vmatpush1.bf16.msra.mxu0 %v267
    %291 = vmatprep.subr.bf16.mxu0 0
    %292 = vmatpush2.bf16.msra.mxu0 0
    %293 = vmatprep.subr.bf16.mxu0 0
    %294 = vmatpush2.bf16.msra.mxu0 0
    %295 = vmatprep.subr.bf16.mxu0 0
    %296 = vmatpush2.bf16.msra.mxu0 0
    %297 = vmatprep.subr.bf16.mxu0 0
    %298 = vmatpush2.bf16.msra.mxu0 0
    %299 = vmatprep.subr.bf16.mxu0 0
    %300 = vmatpush2.bf16.msra.mxu0 0
    %301 = vmatprep.subr.bf16.mxu0 0
    %302 = vmatpush2.bf16.msra.mxu0 0
    %303 = vmatprep.subr.bf16.mxu0 0
    %304 = vmatpush2.bf16.msra.mxu0 0
    %305 = vmatprep.subr.bf16.mxu0 0
    %306 = vmatpush2.bf16.msra.mxu0 0
    %307 = vmatprep.mubr.bf16.mxu0 0
    %308 = vmatmul.mubr.bf16.gmra.mxu0 %v273
    %v309 = vpop.f32.mrf.mxu0
    %v310 = vadd.f32 %v153, %v309
    %v311 = vpop.f32.mrf.mxu0
    %v312 = vadd.f32 %v154, %v311
    %v313 = vpop.f32.mrf.mxu0
    %v314 = vadd.f32 %v155, %v313
    %v315 = vpop.f32.mrf.mxu0
    %v316 = vadd.f32 %v156, %v315
    %317 = vdwg.mxu0
    %v318 = vmax.f32 %v310, %v312
    %319 = vmax.xlane.f32.xlu0 %v318
    %v320 = vpop.xlane.xlu0 %319
    %v321 = vmax.f32 %v314, %v316
    %322 = vmax.xlane.f32.xlu0 %v321
    %v323 = vpop.xlane.xlu0 %322
    %v324 = vsub.f32 %v310, %v320
    %v325 = vsub.f32 %v312, %v320
    %v326 = vsub.f32 %v314, %v323
    %v327 = vsub.f32 %v316, %v323
    %v328 = vmul.f32 %v324, 1.442695
    %v329 = vpow.pop %v328
    %v330 = vmul.f32 %v325, 1.442695
    %v331 = vpow.pop %v330
    %v332 = vmul.f32 %v326, 1.442695
    %v333 = vpow.pop %v332
    %v334 = vmul.f32 %v327, 1.442695
    %v335 = vpow.pop %v334
    %v336 = vld [vmem:[%s4] sm:$0xff]
    %v337 = vld [vmem:[%s4 + $0x8] sm:$0xff]
    %v338 = vld [vmem:[%s4 + $0x10] sm:$0xff]
    %v339 = vld [vmem:[%s4 + $0x18] sm:$0xff]
    %v340 = vld [vmem:[%s4 + $0x20] sm:$0xff]
    %v341 = vld [vmem:[%s4 + $0x28] sm:$0xff]
    %v342 = vld [vmem:[%s4 + $0x30] sm:$0xff]
    %v343 = vld [vmem:[%s4 + $0x38] sm:$0xff]
    %v344 = vld [vmem:[%s4 + $0x40] sm:$0xff]
    %v345 = vld [vmem:[%s4 + $0x48] sm:$0xff]
    %v346 = vld [vmem:[%s4 + $0x50] sm:$0xff]
    %v347 = vld [vmem:[%s4 + $0x58] sm:$0xff]
    %v348 = vld [vmem:[%s4 + $0x60] sm:$0xff]
    %v349 = vld [vmem:[%s4 + $0x68] sm:$0xff]
    %v350 = vld [vmem:[%s4 + $0x70] sm:$0xff]
    %v351 = vld [vmem:[%s4 + $0x78] sm:$0xff]
    %v352 = vld [vmem:[%s4 + $0x80] sm:$0xff]
    %v353 = vld [vmem:[%s4 + $0x88] sm:$0xff]
    %v354 = vld [vmem:[%s4 + $0x90] sm:$0xff]
    %v355 = vld [vmem:[%s4 + $0x98] sm:$0xff]
    %v356 = vld [vmem:[%s4 + $0xa0] sm:$0xff]
    %v357 = vld [vmem:[%s4 + $0xa8] sm:$0xff]
    %v358 = vld [vmem:[%s4 + $0xb0] sm:$0xff]
    %v359 = vld [vmem:[%s4 + $0xb8] sm:$0xff]
    %v360 = vld [vmem:[%s4 + $0xc0] sm:$0xff]
    %v361 = vld [vmem:[%s4 + $0xc8] sm:$0xff]
    %v362 = vld [vmem:[%s4 + $0xd0] sm:$0xff]
    %v363 = vld [vmem:[%s4 + $0xd8] sm:$0xff]
    %v364 = vld [vmem:[%s4 + $0xe0] sm:$0xff]
    %v365 = vld [vmem:[%s4 + $0xe8] sm:$0xff]
    %v366 = vld [vmem:[%s4 + $0xf0] sm:$0xff]
    %v367 = vld [vmem:[%s4 + $0xf8] sm:$0xff]
    %400 = vrot.lane.b32.xlu0 %v336, 64
    %v401 = vpop.permute.xlu0 %400
    %402 = vrot.lane.b32.xlu0 %v337, 64
    %v403 = vpop.permute.xlu0 %402
    %404 = vrot.lane.b32.xlu0 %v338, 64
    %v405 = vpop.permute.xlu0 %404
    %406 = vrot.lane.b32.xlu0 %v339, 64
    %v407 = vpop.permute.xlu0 %406
    %408 = vrot.lane.b32.xlu0 %v340, 64
    %v409 = vpop.permute.xlu0 %408
    %410 = vrot.lane.b32.xlu0 %v341, 64
    %v411 = vpop.permute.xlu0 %410
    %412 = vrot.lane.b32.xlu0 %v342, 64
    %v413 = vpop.permute.xlu0 %412
    %414 = vrot.lane.b32.xlu0 %v343, 64
    %v415 = vpop.permute.xlu0 %414
    %416 = vrot.lane.b32.xlu0 %v344, 64
    %v417 = vpop.permute.xlu0 %416
    %418 = vrot.lane.b32.xlu0 %v345, 64
    %v419 = vpop.permute.xlu0 %418
    %420 = vrot.lane.b32.xlu0 %v346, 64
    %v421 = vpop.permute.xlu0 %420
    %422 = vrot.lane.b32.xlu0 %v347, 64
    %v423 = vpop.permute.xlu0 %422
    %424 = vrot.lane.b32.xlu0 %v348, 64
    %v425 = vpop.permute.xlu0 %424
    %426 = vrot.lane.b32.xlu0 %v349, 64
    %v427 = vpop.permute.xlu0 %426
    %428 = vrot.lane.b32.xlu0 %v350, 64
    %v429 = vpop.permute.xlu0 %428
    %430 = vrot.lane.b32.xlu0 %v351, 64
    %v431 = vpop.permute.xlu0 %430
    %432 = vrot.lane.b32.xlu0 %v352, 64
    %v433 = vpop.permute.xlu0 %432
    %434 = vrot.lane.b32.xlu0 %v353, 64
    %v435 = vpop.permute.xlu0 %434
    %436 = vrot.lane.b32.xlu0 %v354, 64
    %v437 = vpop.permute.xlu0 %436
    %438 = vrot.lane.b32.xlu0 %v355, 64
    %v439 = vpop.permute.xlu0 %438
    %440 = vrot.lane.b32.xlu0 %v356, 64
    %v441 = vpop.permute.xlu0 %440
    %442 = vrot.lane.b32.xlu0 %v357, 64
    %v443 = vpop.permute.xlu0 %442
    %444 = vrot.lane.b32.xlu0 %v358, 64
    %v445 = vpop.permute.xlu0 %444
    %446 = vrot.lane.b32.xlu0 %v359, 64
    %v447 = vpop.permute.xlu0 %446
    %448 = vrot.lane.b32.xlu0 %v360, 64
    %v449 = vpop.permute.xlu0 %448
    %450 = vrot.lane.b32.xlu0 %v361, 64
    %v451 = vpop.permute.xlu0 %450
    %452 = vrot.lane.b32.xlu0 %v362, 64
    %v453 = vpop.permute.xlu0 %452
    %454 = vrot.lane.b32.xlu0 %v363, 64
    %v455 = vpop.permute.xlu0 %454
    %456 = vrot.lane.b32.xlu0 %v364, 64
    %v457 = vpop.permute.xlu0 %456
    %458 = vrot.lane.b32.xlu0 %v365, 64
    %v459 = vpop.permute.xlu0 %458
    %460 = vrot.lane.b32.xlu0 %v366, 64
    %v461 = vpop.permute.xlu0 %460
    %462 = vrot.lane.b32.xlu0 %v367, 64
    %v463 = vpop.permute.xlu0 %462
    %v496 = vmul.f32 %v141, %v401
    %v497 = vmul.f32 %v142, %v403
    %v498 = vmul.f32 %v143, %v405
    %v499 = vmul.f32 %v144, %v407
    %v500 = vmul.f32 %v141, %v409
    %v501 = vmul.f32 %v142, %v411
    %v502 = vmul.f32 %v143, %v413
    %v503 = vmul.f32 %v144, %v415
    %v504 = vmul.f32 %v141, %v417
    %v505 = vmul.f32 %v142, %v419
    %v506 = vmul.f32 %v143, %v421
    %v507 = vmul.f32 %v144, %v423
    %v508 = vmul.f32 %v141, %v425
    %v509 = vmul.f32 %v142, %v427
    %v510 = vmul.f32 %v143, %v429
    %v511 = vmul.f32 %v144, %v431
    %v512 = vmul.f32 %v141, %v433
    %v513 = vmul.f32 %v142, %v435
    %v514 = vmul.f32 %v143, %v437
    %v515 = vmul.f32 %v144, %v439
    %v516 = vmul.f32 %v141, %v441
    %v517 = vmul.f32 %v142, %v443
    %v518 = vmul.f32 %v143, %v445
    %v519 = vmul.f32 %v144, %v447
    %v520 = vmul.f32 %v141, %v449
    %v521 = vmul.f32 %v142, %v451
    %v522 = vmul.f32 %v143, %v453
    %v523 = vmul.f32 %v144, %v455
    %v524 = vmul.f32 %v141, %v457
    %v525 = vmul.f32 %v142, %v459
    %v526 = vmul.f32 %v143, %v461
    %v527 = vmul.f32 %v144, %v463
    %560 = vrot.lane.b32.xlu0 %v496, 64
    %v561 = vpop.permute.xlu0 %560
    %562 = vrot.lane.b32.xlu0 %v497, 64
    %v563 = vpop.permute.xlu0 %562
    %564 = vrot.lane.b32.xlu0 %v498, 64
    %v565 = vpop.permute.xlu0 %564
    %566 = vrot.lane.b32.xlu0 %v499, 64
    %v567 = vpop.permute.xlu0 %566
    %568 = vrot.lane.b32.xlu0 %v500, 64
    %v569 = vpop.permute.xlu0 %568
    %570 = vrot.lane.b32.xlu0 %v501, 64
    %v571 = vpop.permute.xlu0 %570
    %572 = vrot.lane.b32.xlu0 %v502, 64
    %v573 = vpop.permute.xlu0 %572
    %574 = vrot.lane.b32.xlu0 %v503, 64
    %v575 = vpop.permute.xlu0 %574
    %576 = vrot.lane.b32.xlu0 %v504, 64
    %v577 = vpop.permute.xlu0 %576
    %578 = vrot.lane.b32.xlu0 %v505, 64
    %v579 = vpop.permute.xlu0 %578
    %580 = vrot.lane.b32.xlu0 %v506, 64
    %v581 = vpop.permute.xlu0 %580
    %582 = vrot.lane.b32.xlu0 %v507, 64
    %v583 = vpop.permute.xlu0 %582
    %584 = vrot.lane.b32.xlu0 %v508, 64
    %v585 = vpop.permute.xlu0 %584
    %586 = vrot.lane.b32.xlu0 %v509, 64
    %v587 = vpop.permute.xlu0 %586
    %588 = vrot.lane.b32.xlu0 %v510, 64
    %v589 = vpop.permute.xlu0 %588
    %590 = vrot.lane.b32.xlu0 %v511, 64
    %v591 = vpop.permute.xlu0 %590
    %592 = vrot.lane.b32.xlu0 %v512, 64
    %v593 = vpop.permute.xlu0 %592
    %594 = vrot.lane.b32.xlu0 %v513, 64
    %v595 = vpop.permute.xlu0 %594
    %596 = vrot.lane.b32.xlu0 %v514, 64
    %v597 = vpop.permute.xlu0 %596
    %598 = vrot.lane.b32.xlu0 %v515, 64
    %v599 = vpop.permute.xlu0 %598
    %600 = vrot.lane.b32.xlu0 %v516, 64
    %v601 = vpop.permute.xlu0 %600
    %602 = vrot.lane.b32.xlu0 %v517, 64
    %v603 = vpop.permute.xlu0 %602
    %604 = vrot.lane.b32.xlu0 %v518, 64
    %v605 = vpop.permute.xlu0 %604
    %606 = vrot.lane.b32.xlu0 %v519, 64
    %v607 = vpop.permute.xlu0 %606
    %608 = vrot.lane.b32.xlu0 %v520, 64
    %v609 = vpop.permute.xlu0 %608
    %610 = vrot.lane.b32.xlu0 %v521, 64
    %v611 = vpop.permute.xlu0 %610
    %612 = vrot.lane.b32.xlu0 %v522, 64
    %v613 = vpop.permute.xlu0 %612
    %614 = vrot.lane.b32.xlu0 %v523, 64
    %v615 = vpop.permute.xlu0 %614
    %616 = vrot.lane.b32.xlu0 %v524, 64
    %v617 = vpop.permute.xlu0 %616
    %618 = vrot.lane.b32.xlu0 %v525, 64
    %v619 = vpop.permute.xlu0 %618
    %620 = vrot.lane.b32.xlu0 %v526, 64
    %v621 = vpop.permute.xlu0 %620
    %622 = vrot.lane.b32.xlu0 %v527, 64
    %v623 = vpop.permute.xlu0 %622
    %656 = vrot.lane.b32.xlu0 %v336, 32
    %v657 = vpop.permute.xlu0 %656
    %658 = vrot.lane.b32.xlu0 %v337, 32
    %v659 = vpop.permute.xlu0 %658
    %660 = vrot.lane.b32.xlu0 %v338, 32
    %v661 = vpop.permute.xlu0 %660
    %662 = vrot.lane.b32.xlu0 %v339, 32
    %v663 = vpop.permute.xlu0 %662
    %664 = vrot.lane.b32.xlu0 %v340, 32
    %v665 = vpop.permute.xlu0 %664
    %666 = vrot.lane.b32.xlu0 %v341, 32
    %v667 = vpop.permute.xlu0 %666
    %668 = vrot.lane.b32.xlu0 %v342, 32
    %v669 = vpop.permute.xlu0 %668
    %670 = vrot.lane.b32.xlu0 %v343, 32
    %v671 = vpop.permute.xlu0 %670
    %672 = vrot.lane.b32.xlu0 %v344, 32
    %v673 = vpop.permute.xlu0 %672
    %674 = vrot.lane.b32.xlu0 %v345, 32
    %v675 = vpop.permute.xlu0 %674
    %676 = vrot.lane.b32.xlu0 %v346, 32
    %v677 = vpop.permute.xlu0 %676
    %678 = vrot.lane.b32.xlu0 %v347, 32
    %v679 = vpop.permute.xlu0 %678
    %680 = vrot.lane.b32.xlu0 %v348, 32
    %v681 = vpop.permute.xlu0 %680
    %682 = vrot.lane.b32.xlu0 %v349, 32
    %v683 = vpop.permute.xlu0 %682
    %684 = vrot.lane.b32.xlu0 %v350, 32
    %v685 = vpop.permute.xlu0 %684
    %686 = vrot.lane.b32.xlu0 %v351, 32
    %v687 = vpop.permute.xlu0 %686
    %688 = vrot.lane.b32.xlu0 %v352, 32
    %v689 = vpop.permute.xlu0 %688
    %690 = vrot.lane.b32.xlu0 %v353, 32
    %v691 = vpop.permute.xlu0 %690
    %692 = vrot.lane.b32.xlu0 %v354, 32
    %v693 = vpop.permute.xlu0 %692
    %694 = vrot.lane.b32.xlu0 %v355, 32
    %v695 = vpop.permute.xlu0 %694
    %696 = vrot.lane.b32.xlu0 %v356, 32
    %v697 = vpop.permute.xlu0 %696
    %698 = vrot.lane.b32.xlu0 %v357, 32
    %v699 = vpop.permute.xlu0 %698
    %700 = vrot.lane.b32.xlu0 %v358, 32
    %v701 = vpop.permute.xlu0 %700
    %702 = vrot.lane.b32.xlu0 %v359, 32
    %v703 = vpop.permute.xlu0 %702
    %704 = vrot.lane.b32.xlu0 %v360, 32
    %v705 = vpop.permute.xlu0 %704
    %706 = vrot.lane.b32.xlu0 %v361, 32
    %v707 = vpop.permute.xlu0 %706
    %708 = vrot.lane.b32.xlu0 %v362, 32
    %v709 = vpop.permute.xlu0 %708
    %710 = vrot.lane.b32.xlu0 %v363, 32
    %v711 = vpop.permute.xlu0 %710
    %712 = vrot.lane.b32.xlu0 %v364, 32
    %v713 = vpop.permute.xlu0 %712
    %714 = vrot.lane.b32.xlu0 %v365, 32
    %v715 = vpop.permute.xlu0 %714
    %716 = vrot.lane.b32.xlu0 %v366, 32
    %v717 = vpop.permute.xlu0 %716
    %718 = vrot.lane.b32.xlu0 %v367, 32
    %v719 = vpop.permute.xlu0 %718
    %v752 = vsel %vm47, %v561, %v657
    %v753 = vsel %vm47, %v563, %v659
    %v754 = vsel %vm47, %v565, %v661
    %v755 = vsel %vm47, %v567, %v663
    %v756 = vsel %vm47, %v569, %v665
    %v757 = vsel %vm47, %v571, %v667
    %v758 = vsel %vm47, %v573, %v669
    %v759 = vsel %vm47, %v575, %v671
    %v760 = vsel %vm47, %v577, %v673
    %v761 = vsel %vm47, %v579, %v675
    %v762 = vsel %vm47, %v581, %v677
    %v763 = vsel %vm47, %v583, %v679
    %v764 = vsel %vm47, %v585, %v681
    %v765 = vsel %vm47, %v587, %v683
    %v766 = vsel %vm47, %v589, %v685
    %v767 = vsel %vm47, %v591, %v687
    %v768 = vsel %vm47, %v593, %v689
    %v769 = vsel %vm47, %v595, %v691
    %v770 = vsel %vm47, %v597, %v693
    %v771 = vsel %vm47, %v599, %v695
    %v772 = vsel %vm47, %v601, %v697
    %v773 = vsel %vm47, %v603, %v699
    %v774 = vsel %vm47, %v605, %v701
    %v775 = vsel %vm47, %v607, %v703
    %v776 = vsel %vm47, %v609, %v705
    %v777 = vsel %vm47, %v611, %v707
    %v778 = vsel %vm47, %v613, %v709
    %v779 = vsel %vm47, %v615, %v711
    %v780 = vsel %vm47, %v617, %v713
    %v781 = vsel %vm47, %v619, %v715
    %v782 = vsel %vm47, %v621, %v717
    %v783 = vsel %vm47, %v623, %v719
    %v784 = vpack.c.bf16 %v753, %v752
    %v785 = vpack.c.bf16 %v755, %v754
    %v786 = vpack.c.bf16 %v757, %v756
    %v787 = vpack.c.bf16 %v759, %v758
    %v788 = vpack.c.bf16 %v761, %v760
    %v789 = vpack.c.bf16 %v763, %v762
    %v790 = vpack.c.bf16 %v765, %v764
    %v791 = vpack.c.bf16 %v767, %v766
    %v792 = vpack.c.bf16 %v769, %v768
    %v793 = vpack.c.bf16 %v771, %v770
    %v794 = vpack.c.bf16 %v773, %v772
    %v795 = vpack.c.bf16 %v775, %v774
    %v796 = vpack.c.bf16 %v777, %v776
    %v797 = vpack.c.bf16 %v779, %v778
    %v798 = vpack.c.bf16 %v781, %v780
    %v799 = vpack.c.bf16 %v783, %v782
    %v800 = vpack.c.bf16 %v333, %v329
    %v801 = vpack.c.bf16 %v335, %v331
    %802 = vmatprep.subr.bf16.mxu0 0
    %803 = vmatpush1.bf16.msra.mxu0 %v791
    %804 = vmatprep.subr.bf16.mxu0 0
    %805 = vmatpush1.bf16.msra.mxu0 %v790
    %806 = vmatprep.subr.bf16.mxu0 0
    %807 = vmatpush1.bf16.msra.mxu0 %v789
    %808 = vmatprep.subr.bf16.mxu0 0
    %809 = vmatpush1.bf16.msra.mxu0 %v788
    %810 = vmatprep.subr.bf16.mxu0 0
    %811 = vmatpush1.bf16.msra.mxu0 %v787
    %812 = vmatprep.subr.bf16.mxu0 0
    %813 = vmatpush1.bf16.msra.mxu0 %v786
    %814 = vmatprep.subr.bf16.mxu0 0
    %815 = vmatpush1.bf16.msra.mxu0 %v785
    %816 = vmatprep.subr.bf16.mxu0 0
    %817 = vmatpush1.bf16.msra.mxu0 %v784
    %818 = vmatprep.subr.bf16.mxu0 0
    %819 = vmatpush2.bf16.msra.mxu0 %v799
    %820 = vmatprep.subr.bf16.mxu0 0
    %821 = vmatpush2.bf16.msra.mxu0 %v798
    %822 = vmatprep.subr.bf16.mxu0 0
    %823 = vmatpush2.bf16.msra.mxu0 %v797
    %824 = vmatprep.subr.bf16.mxu0 0
    %825 = vmatpush2.bf16.msra.mxu0 %v796
    %826 = vmatprep.subr.bf16.mxu0 0
    %827 = vmatpush2.bf16.msra.mxu0 %v795
    %828 = vmatprep.subr.bf16.mxu0 0
    %829 = vmatpush2.bf16.msra.mxu0 %v794
    %830 = vmatprep.subr.bf16.mxu0 0
    %831 = vmatpush2.bf16.msra.mxu0 %v793
    %832 = vmatprep.subr.bf16.mxu0 0
    %833 = vmatpush2.bf16.msra.mxu0 %v792
    %834 = vmatprep.mubr.bf16.mxu0 %v801
    %835 = vmatmul.mubr.bf16.gmra.mxu0 %v800
    %v836 = vpop.f32.mrf.mxu0
    %v837 = vadd.f32 0.0, %v836
    %v838 = vpop.f32.mrf.mxu0
    %v839 = vpop.f32.mrf.mxu0
    %v840 = vadd.f32 0.0, %v839
    %v841 = vpop.f32.mrf.mxu0
    %842 = vdwg.mxu0
    %v843 = vmax.f32 %v837, 1e-30
    %v844 = vmax.f32 %v840, 1e-30
    %v845 = vrcp.pop %v843
    %v846 = vrcp.pop %v844
    %849 = vrot.lane.b32.xlu0 %v845, 96
    %v850 = vpop.permute.xlu0 %849
    %851 = vrot.lane.b32.xlu0 %v846, 96
    %v852 = vpop.permute.xlu0 %851
    %v855 = vmul.f32 %v837, %v850
    %v856 = vmul.f32 %v840, %v852
    %v857 = vpack.c.bf16 %v856, %v855
    %v858 = vlaneseq
    %v859 = vshrl.u32 %v858, 7
    %v860 = vsub.s32 3, %v859
    %v861 = vrot.slane %v114, %v860
    %862 = vrot.lane.b32.xlu0 %v43, 32
    %v863 = vpop.permute.xlu0 %862
    %864 = vrot.lane.b32.xlu0 %v44, 32
    %v865 = vpop.permute.xlu0 %864
    %v869 = vsel %vm47, %v857, 0
    %871 = vmatprep.subr.bf16.mxu0 0
    %872 = vmatpush1.bf16.msra.mxu0 0
    %873 = vmatprep.subr.bf16.mxu0 0
    %874 = vmatpush1.bf16.msra.mxu0 0
    %875 = vmatprep.subr.bf16.mxu0 0
    %876 = vmatpush1.bf16.msra.mxu0 0
    %877 = vmatprep.subr.bf16.mxu0 0
    %878 = vmatpush1.bf16.msra.mxu0 0
    %879 = vmatprep.subr.bf16.mxu0 0
    %880 = vmatpush1.bf16.msra.mxu0 0
    %881 = vmatprep.subr.bf16.mxu0 0
    %882 = vmatpush1.bf16.msra.mxu0 0
    %883 = vmatprep.subr.bf16.mxu0 0
    %884 = vmatpush1.bf16.msra.mxu0 %v865
    %885 = vmatprep.subr.bf16.mxu0 0
    %886 = vmatpush1.bf16.msra.mxu0 %v863
    %887 = vmatprep.subr.bf16.mxu0 0
    %888 = vmatpush2.bf16.msra.mxu0 0
    %889 = vmatprep.subr.bf16.mxu0 0
    %890 = vmatpush2.bf16.msra.mxu0 0
    %891 = vmatprep.subr.bf16.mxu0 0
    %892 = vmatpush2.bf16.msra.mxu0 0
    %893 = vmatprep.subr.bf16.mxu0 0
    %894 = vmatpush2.bf16.msra.mxu0 0
    %895 = vmatprep.subr.bf16.mxu0 0
    %896 = vmatpush2.bf16.msra.mxu0 0
    %897 = vmatprep.subr.bf16.mxu0 0
    %898 = vmatpush2.bf16.msra.mxu0 0
    %899 = vmatprep.subr.bf16.mxu0 0
    %900 = vmatpush2.bf16.msra.mxu0 0
    %901 = vmatprep.subr.bf16.mxu0 0
    %902 = vmatpush2.bf16.msra.mxu0 0
    %903 = vmatprep.mubr.bf16.mxu0 0
    %904 = vmatmul.mubr.bf16.gmra.mxu0 %v869
    %v905 = vpop.f32.mrf.mxu0
    %v906 = vadd.f32 %v861, %v905
    %v907 = vpop.f32.mrf.mxu0
    %v908 = vpop.f32.mrf.mxu0
    %v909 = vadd.f32 %v861, %v908
    %v910 = vpop.f32.mrf.mxu0
    %911 = vdwg.mxu0
    %v912 = vsel %vm47, %v906, 0.0
    %913 = vadd.xlane.f32.xlu0 %v912
    %v914 = vpop.xlane.xlu0 %913
    %v915 = vsel %vm47, %v909, 0.0
    %916 = vadd.xlane.f32.xlu0 %v915
    %v917 = vpop.xlane.xlu0 %916
    %v918 = vrcp.pop 32.0
    %v919 = vmul.f32 %v914, %v918
    %v920 = vmul.f32 %v917, %v918
    %v921 = vsub.f32 %v906, %v919
    %v922 = vsub.f32 %v909, %v920
    %v923 = vmul.f32 %v921, %v921
    %v924 = vmul.f32 %v922, %v922
    %v925 = vsel %vm47, %v923, 0.0
    %926 = vadd.xlane.f32.xlu0 %v925
    %v927 = vpop.xlane.xlu0 %926
    %v928 = vsel %vm47, %v924, 0.0
    %929 = vadd.xlane.f32.xlu0 %v928
    %v930 = vpop.xlane.xlu0 %929
    %v931 = vmul.f32 %v927, %v918
    %v932 = vmul.f32 %v930, %v918
    %v933 = vadd.f32 %v931, 1e-05
    %v934 = vadd.f32 %v932, 1e-05
    %v935 = vrsqrt.pop %v933
    %v936 = vrsqrt.pop %v934
    %v937 = vmul.f32 %v921, %v935
    %v938 = vmul.f32 %v922, %v936
    %v939 = vlaneseq
    %v940 = vshrl.u32 %v939, 7
    %v941 = vsub.s32 4, %v940
    %v942 = vrot.slane %v114, %v941
    %v943 = vmul.f32 %v937, %v942
    %v944 = vmul.f32 %v938, %v942
    %v945 = vlaneseq
    %v946 = vshrl.u32 %v945, 7
    %v947 = vsub.s32 5, %v946
    %v948 = vrot.slane %v114, %v947
    %v949 = vadd.f32 %v943, %v948
    %v950 = vadd.f32 %v944, %v948
    %951 = vst.msk [vmem:[#allocation2] sm:$0xff] %vm47, %v949
    %952 = vst.msk [vmem:[#allocation2 + $0x8] sm:$0xff] %vm47, %v950
    // Predicated region
    $region22: #{tpu_custom_call.1} parent=1 // pred_check
      _
    $region23: #{tpu_custom_call.1} parent=1 // pred_check_branch
      %954 = sbr.rel (0) target = $region25
    $region24: #{tpu_custom_call.1} parent=1 // pred_region
      %s956 = ssub.s32 256, 256
      %957 = vsyncadd [#allocation3], %s956
      %s958 = sshll.u32 [#allocation2], 4
      %s959 = int_to_ptr.vmem [resolvable:$true] %s958
      %964 = dma.vmem_to_hbm [thread:$0]  %s959, 256, %s5, [#allocation3], 128, 128, 8
    $region25: #{tpu_custom_call.1} parent=1 // pred_fallthru
      _
    // Predicated region
    $region26: #{tpu_custom_call.1} parent=1 // pred_check
      _
    $region27: #{tpu_custom_call.1} parent=1 // pred_check_branch
      %966 = sbr.rel (0) target = $region29
    $region28: #{tpu_custom_call.1} parent=1 // pred_region
      %967 = dma.done [#allocation3], 256
    $region29: #{tpu_custom_call.1} parent=1 // pred_fallthru
      _
    %968 = vsyncpa [#allocation3], 1

</llo_original>
